<compile_context>
chip_gen: v5e
topology: v5e:2x2
jax: 0.10.0
libtpu: 0.0.40
codegen_flags: <defaults>
</compile_context>

<pallas_src>
import jax
import jax.numpy as jnp
from jax.experimental import pallas as pl
from jax.experimental.pallas import tpu as pltpu

HIDDEN = 128
LN_EPS = 1e-5
NEG_BIG = -1e30  # logit value for padded action columns -> exp underflows to exactly 0


def _round_up(n, m):
    return ((n + m - 1) // m) * m


def _layernorm(h, gamma, beta):
    # Fused one-pass stats: var = E[h^2] - mu^2 (safe: h = tanh(...) is in [-1, 1]).
    inv_n = 1.0 / HIDDEN
    s1 = jnp.sum(h, axis=-1, keepdims=True)
    s2 = jnp.sum(h * h, axis=-1, keepdims=True)
    mu = s1 * inv_n
    var = s2 * inv_n - mu * mu
    return (h - mu) * jax.lax.rsqrt(var + LN_EPS) * gamma + beta


def actor_kernel(x_ref, w1_ref, w2_ref, w3_ref, b3_ref, p_ref, out_ref):
    # Packed skinny params: rows 0..5 = b1, g1, be1, b2, g2, be2 (rows 6,7 unused).
    p = p_ref[...]
    b1, g1, be1 = p[0:1], p[1:2], p[2:3]
    b2, g2, be2 = p[3:4], p[4:5], p[5:6]

    x = x_ref[...]

    # fc1 -> tanh -> LayerNorm   (bf16 at the MXU, f32 accumulate / elementwise)
    h = jnp.dot(x.astype(jnp.bfloat16), w1_ref[...],
                preferred_element_type=jnp.float32) + b1
    h = jnp.tanh(h)
    h = _layernorm(h, g1, be1)

    # fc2 -> tanh -> LayerNorm
    h = jnp.dot(h.astype(jnp.bfloat16), w2_ref[...],
                preferred_element_type=jnp.float32) + b2
    h = jnp.tanh(h)
    h = _layernorm(h, g2, be2)

    # action_head (128 -> out_p, lane-padded; f32 for logit precision) + softmax.
    # Padded columns have w3 == 0 and b3 == -1e30, so exp(...) == 0 there and the
    # softmax over the real action columns is exactly the unpadded softmax.
    logits = jnp.dot(h, w3_ref[...], preferred_element_type=jnp.float32) + b3_ref[...]
    m = jnp.max(logits, axis=-1, keepdims=True)
    e = jnp.exp(logits - m)
    out_ref[...] = (e / jnp.sum(e, axis=-1, keepdims=True)).astype(out_ref.dtype)


def actor_forward(x, params, *, block_b=512):
    B, D = x.shape
    out_dim = params["w3"].shape[1]
    out_p = _round_up(out_dim, 128)  # lane-dense output width

    # Batch tile: big tile when the batch is big, otherwise round the whole batch
    # up to the (8, *) sublane tile so everything runs in one grid step.
    TB = block_b if B >= block_b else _round_up(B, 8)
    Bp = _round_up(B, TB)
    if Bp != B:
        x = jnp.pad(x, ((0, Bp - B), (0, 0)))

    # Pack the six skinny LayerNorm / bias params into one (8, 128) tile.
    packed = jnp.concatenate(
        [
            params["b1"], params["g1"], params["be1"],
            params["b2"], params["g2"], params["be2"],
            jnp.zeros((2, HIDDEN), jnp.float32),
        ],
        axis=0,
    )

    # Cast the two big weight matrices to bf16 once, outside the kernel.
    w1 = params["w1"].astype(jnp.bfloat16)               # (D, 128)
    w2 = params["w2"].astype(jnp.bfloat16)               # (128, 128)
    # Lane-pad the action head so the output tile is a full multiple of 128 lanes.
    w3 = jnp.pad(params["w3"], ((0, 0), (0, out_p - out_dim)))          # zeros
    b3 = jnp.pad(params["b3"], ((0, 0), (0, out_p - out_dim)),
                 constant_values=NEG_BIG)                               # -1e30 pad

    grid = (Bp // TB,)
    out = pl.pallas_call(
        actor_kernel,
        out_shape=jax.ShapeDtypeStruct((Bp, out_p), jnp.float32),
        grid_spec=pltpu.PrefetchScalarGridSpec(
            num_scalar_prefetch=0,
            grid=grid,
            in_specs=[
                pl.BlockSpec((TB, D), lambda i: (i, 0)),           # x: tiled over batch
                pl.BlockSpec((D, HIDDEN), lambda i: (0, 0)),       # w1: resident
                pl.BlockSpec((HIDDEN, HIDDEN), lambda i: (0, 0)),  # w2: resident
                pl.BlockSpec((HIDDEN, out_p), lambda i: (0, 0)),   # w3: resident (padded)
                pl.BlockSpec((1, out_p), lambda i: (0, 0)),        # b3: resident (padded)
                pl.BlockSpec((8, HIDDEN), lambda i: (0, 0)),       # packed skinny params
            ],
            out_specs=pl.BlockSpec((TB, out_p), lambda i: (i, 0)),
        ),
        compiler_params=pltpu.CompilerParams(
            dimension_semantics=("parallel",),
        ),
    )(x, w1, w2, w3, b3, packed)
    return out[:B, :out_dim]


def init_params(key, input_dim, output_dim):
    """Deterministic init mirroring the PyTorch Actor's __init__."""
    ks = jax.random.split(key, 6)
    gain = 5.0 / 3.0  # nn.init.calculate_gain('tanh')

    def xavier_uniform(k, fan_in, fan_out, g):
        bound = g * jnp.sqrt(6.0 / (fan_in + fan_out))
        # stored as (in, out) == transpose of PyTorch's (out, in)
        return jax.random.uniform(k, (fan_in, fan_out), jnp.float32, -bound, bound)

    def linear_bias(k, fan_in, fan_out):
        bound = 1.0 / jnp.sqrt(fan_in)
        return jax.random.uniform(k, (1, fan_out), jnp.float32, -bound, bound)

    # fc1: Linear(input_dim, 128), xavier_uniform(tanh gain), default bias init
    w1 = xavier_uniform(ks[0], input_dim, HIDDEN, gain)
    b1 = linear_bias(ks[1], input_dim, HIDDEN)
    # fc2: Linear(128, 128), xavier_uniform(tanh gain)
    w2 = xavier_uniform(ks[2], HIDDEN, HIDDEN, gain)
    b2 = linear_bias(ks[3], HIDDEN, HIDDEN)
    # action_head: Linear(128, output), default PyTorch init (kaiming-uniform scale)
    bound3 = 1.0 / jnp.sqrt(HIDDEN)
    w3 = jax.random.uniform(ks[4], (HIDDEN, output_dim), jnp.float32, -bound3, bound3)
    b3 = jax.random.uniform(ks[5], (1, output_dim), jnp.float32, -bound3, bound3)
    # LayerNorm params default: weight=1, bias=0
    g1 = jnp.ones((1, HIDDEN), jnp.float32)
    be1 = jnp.zeros((1, HIDDEN), jnp.float32)
    g2 = jnp.ones((1, HIDDEN), jnp.float32)
    be2 = jnp.zeros((1, HIDDEN), jnp.float32)

    return dict(w1=w1, b1=b1, g1=g1, be1=be1,
                w2=w2, b2=b2, g2=g2, be2=be2,
                w3=w3, b3=b3)


def actor_ref(x, p, *, bf16_matmul=False):
    """Pure-JAX reference. bf16_matmul=True mirrors the kernel's MXU-boundary cast."""
    def ln(h, g, b):
        mu = jnp.mean(h, axis=-1, keepdims=True)
        var = jnp.mean((h - mu) ** 2, axis=-1, keepdims=True)
        return (h - mu) * jax.lax.rsqrt(var + LN_EPS) * g + b

    def mm(a, w):
        if bf16_matmul:
            return jnp.dot(a.astype(jnp.bfloat16), w.astype(jnp.bfloat16),
                           preferred_element_type=jnp.float32)
        return jnp.dot(a, w, preferred_element_type=jnp.float32)

    h = jnp.tanh(mm(x, p["w1"]) + p["b1"])
    h = ln(h, p["g1"], p["be1"])
    h = jnp.tanh(mm(h, p["w2"]) + p["b2"])
    h = ln(h, p["g2"], p["be2"])
    logits = jnp.dot(h, p["w3"], preferred_element_type=jnp.float32) + p["b3"]
    return jax.nn.softmax(logits, axis=1)


if __name__ == "__main__":
    key = jax.random.PRNGKey(0)
    k_param, k_x1, k_x2 = jax.random.split(key, 3)

    INPUT_DIM, OUTPUT_DIM = 32, 8
    params = init_params(k_param, INPUT_DIM, OUTPUT_DIM)

    # Small case (single tile).
    x_small = jax.random.normal(k_x1, (8, INPUT_DIM), jnp.float32)
    out_small = actor_forward(x_small, params)
    jax.block_until_ready(out_small)
    assert out_small.shape == (8, OUTPUT_DIM)
    # Tight check vs. a reference using the same bf16-at-MXU cast.
    assert jnp.allclose(out_small, actor_ref(x_small, params, bf16_matmul=True),
                        atol=1e-4, rtol=1e-4)
    # Loose check vs. the exact f32 module semantics (bf16 matmul precision).
    assert jnp.allclose(out_small, actor_ref(x_small, params), atol=2e-2)
    # Probabilities sum to 1 per row.
    assert jnp.allclose(jnp.sum(out_small, axis=1), 1.0, atol=1e-5)

    # Larger ragged batch: exercises the batch grid, padding and slicing path.
    x_big = jax.random.normal(k_x2, (300, INPUT_DIM), jnp.float32)
    out_big = actor_forward(x_big, params, block_b=256)  # grid=(2,), Bp=512
    jax.block_until_ready(out_big)
    assert out_big.shape == (300, OUTPUT_DIM)
    assert jnp.allclose(out_big, actor_ref(x_big, params, bf16_matmul=True),
                        atol=1e-4, rtol=1e-4)
    assert jnp.allclose(out_big, actor_ref(x_big, params), atol=2e-2)
    assert jnp.allclose(jnp.sum(out_big, axis=1), 1.0, atol=1e-5)

    print("KERNEL_OK")
</pallas_src>

<mosaic_0001>
module attributes {stable_mosaic.version = 11 : i64} {
  func.func @actor_kernel(%arg0: i32, %arg1: memref<8x32xf32, #tpu.memory_space<vmem>>, %arg2: memref<32x128xbf16, #tpu.memory_space<vmem>>, %arg3: memref<128x128xbf16, #tpu.memory_space<vmem>>, %arg4: memref<128x128xf32, #tpu.memory_space<vmem>>, %arg5: memref<1x128xf32, #tpu.memory_space<vmem>>, %arg6: memref<8x128xf32, #tpu.memory_space<vmem>>, %arg7: memref<8x128xf32, #tpu.memory_space<vmem>>) attributes {dimension_semantics = [#tpu.dimension_semantics<parallel>], iteration_bounds = array<i64: 1>, scalar_prefetch = 0 : i64, scratch_operands = 0 : i64, tpu.core_type = #tpu.core_type<tc>, window_params = [{transform_indices = @transform_0, window_bounds = array<i64: 8, 32>}, {pipeline_mode = #tpu.pipeline_mode<synchronous>, transform_indices = @transform_1, window_bounds = array<i64: 32, 128>}, {pipeline_mode = #tpu.pipeline_mode<synchronous>, transform_indices = @transform_2, window_bounds = array<i64: 128, 128>}, {pipeline_mode = #tpu.pipeline_mode<synchronous>, transform_indices = @transform_3, window_bounds = array<i64: 128, 128>}, {pipeline_mode = #tpu.pipeline_mode<synchronous>, transform_indices = @transform_4, window_bounds = array<i64: 1, 128>}, {pipeline_mode = #tpu.pipeline_mode<synchronous>, transform_indices = @transform_5, window_bounds = array<i64: 8, 128>}, {transform_indices = @transform_6, window_bounds = array<i64: 8, 128>}]} {
    %c0 = arith.constant 0 : index
    %c0_0 = arith.constant 0 : index
    %0 = vector.load %arg6[%c0, %c0_0] : memref<8x128xf32, #tpu.memory_space<vmem>>, vector<8x128xf32>
    %1 = vector.extract_strided_slice %0 {offsets = [0, 0], sizes = [1, 128], strides = [1, 1]} : vector<8x128xf32> to vector<1x128xf32>
    %2 = vector.extract_strided_slice %0 {offsets = [1, 0], sizes = [1, 128], strides = [1, 1]} : vector<8x128xf32> to vector<1x128xf32>
    %3 = vector.extract_strided_slice %0 {offsets = [2, 0], sizes = [1, 128], strides = [1, 1]} : vector<8x128xf32> to vector<1x128xf32>
    %4 = vector.extract_strided_slice %0 {offsets = [3, 0], sizes = [1, 128], strides = [1, 1]} : vector<8x128xf32> to vector<1x128xf32>
    %5 = vector.extract_strided_slice %0 {offsets = [4, 0], sizes = [1, 128], strides = [1, 1]} : vector<8x128xf32> to vector<1x128xf32>
    %6 = vector.extract_strided_slice %0 {offsets = [5, 0], sizes = [1, 128], strides = [1, 1]} : vector<8x128xf32> to vector<1x128xf32>
    %c0_1 = arith.constant 0 : index
    %c0_2 = arith.constant 0 : index
    %7 = vector.load %arg1[%c0_1, %c0_2] : memref<8x32xf32, #tpu.memory_space<vmem>>, vector<8x32xf32>
    %8 = arith.truncf %7 : vector<8x32xf32> to vector<8x32xbf16>
    %c0_3 = arith.constant 0 : index
    %c0_4 = arith.constant 0 : index
    %9 = vector.load %arg2[%c0_3, %c0_4] : memref<32x128xbf16, #tpu.memory_space<vmem>>, vector<32x128xbf16>
    %cst = arith.constant dense<0.000000e+00> : vector<8x128xf32>
    %10 = tpu.matmul %8, %9, %cst {dimension_numbers = #tpu.dot_dimension_numbers<[1], [0], [0], [1], [0, 0, 1, 1], [], []>} : vector<8x32xbf16>, vector<32x128xbf16>, vector<8x128xf32> -> vector<8x128xf32>
    %11 = vector.broadcast %1 : vector<1x128xf32> to vector<8x128xf32>
    %12 = arith.addf %10, %11 : vector<8x128xf32>
    %13 = math.tanh %12 : vector<8x128xf32>
    %cst_5 = arith.constant dense<0.000000e+00> : vector<8xf32>
    %14 = vector.multi_reduction <add>, %13, %cst_5 [1] : vector<8x128xf32> to vector<8xf32>
    %15 = vector.shape_cast %14 : vector<8xf32> to vector<8x1xf32>
    %16 = arith.mulf %13, %13 : vector<8x128xf32>
    %cst_6 = arith.constant dense<0.000000e+00> : vector<8xf32>
    %17 = vector.multi_reduction <add>, %16, %cst_6 [1] : vector<8x128xf32> to vector<8xf32>
    %18 = vector.shape_cast %17 : vector<8xf32> to vector<8x1xf32>
    %cst_7 = arith.constant 7.812500e-03 : f32
    %19 = vector.broadcast %cst_7 : f32 to vector<8x1xf32>
    %20 = arith.mulf %15, %19 : vector<8x1xf32>
    %cst_8 = arith.constant 7.812500e-03 : f32
    %21 = vector.broadcast %cst_8 : f32 to vector<8x1xf32>
    %22 = arith.mulf %18, %21 : vector<8x1xf32>
    %23 = arith.mulf %20, %20 : vector<8x1xf32>
    %24 = arith.subf %22, %23 : vector<8x1xf32>
    %25 = vector.broadcast %20 : vector<8x1xf32> to vector<8x128xf32>
    %26 = arith.subf %13, %25 : vector<8x128xf32>
    %cst_9 = arith.constant 9.99999974E-6 : f32
    %27 = vector.broadcast %cst_9 : f32 to vector<8x1xf32>
    %28 = arith.addf %24, %27 : vector<8x1xf32>
    %29 = math.rsqrt %28 : vector<8x1xf32>
    %30 = vector.broadcast %29 : vector<8x1xf32> to vector<8x128xf32>
    %31 = arith.mulf %26, %30 : vector<8x128xf32>
    %32 = vector.broadcast %2 : vector<1x128xf32> to vector<8x128xf32>
    %33 = arith.mulf %31, %32 : vector<8x128xf32>
    %34 = vector.broadcast %3 : vector<1x128xf32> to vector<8x128xf32>
    %35 = arith.addf %33, %34 : vector<8x128xf32>
    %36 = arith.truncf %35 : vector<8x128xf32> to vector<8x128xbf16>
    %c0_10 = arith.constant 0 : index
    %c0_11 = arith.constant 0 : index
    %37 = vector.load %arg3[%c0_10, %c0_11] : memref<128x128xbf16, #tpu.memory_space<vmem>>, vector<128x128xbf16>
    %cst_12 = arith.constant dense<0.000000e+00> : vector<8x128xf32>
    %38 = tpu.matmul %36, %37, %cst_12 {dimension_numbers = #tpu.dot_dimension_numbers<[1], [0], [0], [1], [0, 0, 1, 1], [], []>} : vector<8x128xbf16>, vector<128x128xbf16>, vector<8x128xf32> -> vector<8x128xf32>
    %39 = vector.broadcast %4 : vector<1x128xf32> to vector<8x128xf32>
    %40 = arith.addf %38, %39 : vector<8x128xf32>
    %41 = math.tanh %40 : vector<8x128xf32>
    %cst_13 = arith.constant dense<0.000000e+00> : vector<8xf32>
    %42 = vector.multi_reduction <add>, %41, %cst_13 [1] : vector<8x128xf32> to vector<8xf32>
    %43 = vector.shape_cast %42 : vector<8xf32> to vector<8x1xf32>
    %44 = arith.mulf %41, %41 : vector<8x128xf32>
    %cst_14 = arith.constant dense<0.000000e+00> : vector<8xf32>
    %45 = vector.multi_reduction <add>, %44, %cst_14 [1] : vector<8x128xf32> to vector<8xf32>
    %46 = vector.shape_cast %45 : vector<8xf32> to vector<8x1xf32>
    %cst_15 = arith.constant 7.812500e-03 : f32
    %47 = vector.broadcast %cst_15 : f32 to vector<8x1xf32>
    %48 = arith.mulf %43, %47 : vector<8x1xf32>
    %cst_16 = arith.constant 7.812500e-03 : f32
    %49 = vector.broadcast %cst_16 : f32 to vector<8x1xf32>
    %50 = arith.mulf %46, %49 : vector<8x1xf32>
    %51 = arith.mulf %48, %48 : vector<8x1xf32>
    %52 = arith.subf %50, %51 : vector<8x1xf32>
    %53 = vector.broadcast %48 : vector<8x1xf32> to vector<8x128xf32>
    %54 = arith.subf %41, %53 : vector<8x128xf32>
    %cst_17 = arith.constant 9.99999974E-6 : f32
    %55 = vector.broadcast %cst_17 : f32 to vector<8x1xf32>
    %56 = arith.addf %52, %55 : vector<8x1xf32>
    %57 = math.rsqrt %56 : vector<8x1xf32>
    %58 = vector.broadcast %57 : vector<8x1xf32> to vector<8x128xf32>
    %59 = arith.mulf %54, %58 : vector<8x128xf32>
    %60 = vector.broadcast %5 : vector<1x128xf32> to vector<8x128xf32>
    %61 = arith.mulf %59, %60 : vector<8x128xf32>
    %62 = vector.broadcast %6 : vector<1x128xf32> to vector<8x128xf32>
    %63 = arith.addf %61, %62 : vector<8x128xf32>
    %c0_18 = arith.constant 0 : index
    %c0_19 = arith.constant 0 : index
    %64 = vector.load %arg4[%c0_18, %c0_19] : memref<128x128xf32, #tpu.memory_space<vmem>>, vector<128x128xf32>
    %cst_20 = arith.constant dense<0.000000e+00> : vector<8x128xf32>
    %65 = tpu.matmul %63, %64, %cst_20 {dimension_numbers = #tpu.dot_dimension_numbers<[1], [0], [0], [1], [0, 0, 1, 1], [], []>} : vector<8x128xf32>, vector<128x128xf32>, vector<8x128xf32> -> vector<8x128xf32>
    %c0_21 = arith.constant 0 : index
    %c0_22 = arith.constant 0 : index
    %66 = vector.load %arg5[%c0_21, %c0_22] : memref<1x128xf32, #tpu.memory_space<vmem>>, vector<1x128xf32>
    %67 = vector.broadcast %66 : vector<1x128xf32> to vector<8x128xf32>
    %68 = arith.addf %65, %67 : vector<8x128xf32>
    %cst_23 = arith.constant dense<0xFF800000> : vector<8xf32>
    %69 = vector.multi_reduction <maximumf>, %68, %cst_23 [1] : vector<8x128xf32> to vector<8xf32>
    %70 = vector.shape_cast %69 : vector<8xf32> to vector<8x1xf32>
    %71 = vector.broadcast %70 : vector<8x1xf32> to vector<8x128xf32>
    %72 = arith.subf %68, %71 : vector<8x128xf32>
    %73 = math.exp %72 : vector<8x128xf32>
    %cst_24 = arith.constant dense<0.000000e+00> : vector<8xf32>
    %74 = vector.multi_reduction <add>, %73, %cst_24 [1] : vector<8x128xf32> to vector<8xf32>
    %75 = vector.shape_cast %74 : vector<8xf32> to vector<8x1xf32>
    %76 = vector.broadcast %75 : vector<8x1xf32> to vector<8x128xf32>
    %77 = arith.divf %73, %76 : vector<8x128xf32>
    %c0_25 = arith.constant 0 : index
    %c0_26 = arith.constant 0 : index
    %78 = vector.load %arg7[%c0_25, %c0_26] : memref<8x128xf32, #tpu.memory_space<vmem>>, vector<8x128xf32>
    tpu.vector_store %arg7[%c0_25, %c0_26], %77 {strides = array<i32>} : memref<8x128xf32, #tpu.memory_space<vmem>>, vector<8x128xf32>,
    return
  }
  func.func @transform_0(%arg0: i32) -> (i32, i32) {
    %c0_i32 = arith.constant 0 : i32
    %c0_i32_0 = arith.constant 0 : i32
    return %arg0, %c0_i32 : i32, i32
  }
  func.func @transform_1(%arg0: i32) -> (i32, i32) {
    %c0_i32 = arith.constant 0 : i32
    %c0_i32_0 = arith.constant 0 : i32
    %c0_i32_1 = arith.constant 0 : i32
    return %c0_i32, %c0_i32_0 : i32, i32
  }
  func.func @transform_2(%arg0: i32) -> (i32, i32) {
    %c0_i32 = arith.constant 0 : i32
    %c0_i32_0 = arith.constant 0 : i32
    %c0_i32_1 = arith.constant 0 : i32
    return %c0_i32, %c0_i32_0 : i32, i32
  }
  func.func @transform_3(%arg0: i32) -> (i32, i32) {
    %c0_i32 = arith.constant 0 : i32
    %c0_i32_0 = arith.constant 0 : i32
    %c0_i32_1 = arith.constant 0 : i32
    return %c0_i32, %c0_i32_0 : i32, i32
  }
  func.func @transform_4(%arg0: i32) -> (i32, i32) {
    %c0_i32 = arith.constant 0 : i32
    %c0_i32_0 = arith.constant 0 : i32
    %c0_i32_1 = arith.constant 0 : i32
    return %c0_i32, %c0_i32_0 : i32, i32
  }
  func.func @transform_5(%arg0: i32) -> (i32, i32) {
    %c0_i32 = arith.constant 0 : i32
    %c0_i32_0 = arith.constant 0 : i32
    %c0_i32_1 = arith.constant 0 : i32
    return %c0_i32, %c0_i32_0 : i32, i32
  }
  func.func @transform_6(%arg0: i32) -> (i32, i32) {
    %c0_i32 = arith.constant 0 : i32
    %c0_i32_0 = arith.constant 0 : i32
    return %arg0, %c0_i32 : i32, i32
  }
}

</mosaic_0001>

<llo_original>
// kernel: tpu_custom_call.1
$region0: #{tpu_custom_call.1}
  #allocation0 [shape = 'u32[]', space=smem, size = 0x4, offset = 0x4, fixed_abs, tag = 'smem constant byte address 0x4 - core index']
  #allocation1 [shape = 'u32[72,128]{1,0:T(1,128)}', space=vmem, size = 0x9000, scoped, tag = 'internal scratch']
  %s0 = inlined_call_operand.hbm [shape: f32[8,32], index: 0, kind: input, shape index: {}]
  %s1 = inlined_call_operand.hbm [shape: bf16[32,128], index: 1, kind: input, shape index: {}]
  %s2 = inlined_call_operand.hbm [shape: bf16[128,128], index: 2, kind: input, shape index: {}]
  %s3 = inlined_call_operand.hbm [shape: f32[128,128], index: 3, kind: input, shape index: {}]
  %s4 = inlined_call_operand.vmem [shape: f32[1,128], index: 4, kind: input, shape index: {}]
  %s5 = inlined_call_operand.hbm [shape: f32[8,128], index: 5, kind: input, shape index: {}]
  %s6 = inlined_call_operand.hbm [shape: f32[8,128], index: 6, kind: output, shape index: {}]
  %s7 = sld [smem:[#allocation0]]
  $region54: #{tpu_custom_call.1} parent=0
    _
  %s9 = ssub.s32 1, %s7
  %s10 = scalar_select 0, %s9, %s7
  $region1: #{tpu_custom_call.1} parent=0
    #allocation2 [shape = 'u8[4096]{0}', space=vmem, size = 0x1000, scoped, tag = 'input window, operand 0, single buffered']
    #allocation3 [shape = 's32[1]{0}', space=sflag, size = 0x4, scoped, tag = 'scoped memory for tpu_custom_call.1']
    #allocation4 [shape = 's32[1]{0}', space=sflag, size = 0x4, scoped, tag = 'scoped memory for tpu_custom_call.1']
    #allocation5 [shape = 'u8[8192]{0}', space=vmem, size = 0x2000, scoped, tag = 'input window, operand 1, single buffered']
    #allocation6 [shape = 's32[1]{0}', space=sflag, size = 0x4, scoped, tag = 'scoped memory for tpu_custom_call.1']
    #allocation7 [shape = 'u8[32768]{0}', space=vmem, size = 0x8000, scoped, tag = 'input window, operand 2, single buffered']
    #allocation8 [shape = 'u8[65536]{0}', space=vmem, size = 0x10000, scoped, tag = 'input window, operand 3, single buffered']
    #allocation9 [shape = 's32[1]{0}', space=sflag, size = 0x4, scoped, tag = 'scoped memory for tpu_custom_call.1']
    #allocation10 [shape = 'u8[4096]{0}', space=vmem, size = 0x1000, scoped, tag = 'input window, operand 5, single buffered']
    #allocation11 [shape = 'u8[4096]{0}', space=vmem, size = 0x1000, scoped, tag = 'output window, operand 0, single buffered']
    %11 = vsyncpa [#allocation3], 0
    %12 = vsyncpa [#allocation6], 0
    %13 = vsyncpa [#allocation9], 0
    %14 = vsyncpa [#allocation4], 0
    // Predicated region
    $region2: #{tpu_custom_call.1} parent=1 // pred_check
      _
    $region3: #{tpu_custom_call.1} parent=1 // pred_check_branch
      %16 = sbr.rel (0) target = $region5
    $region4: #{tpu_custom_call.1} parent=1 // pred_region
      %18 = vsyncadd [#allocation3], 0
      %s20 = sshll.u32 %s0, 4
      %s21 = int_to_ptr.hbm [resolvable:$true] %s20
      %s22 = sshll.u32 [#allocation2], 4
      %s23 = int_to_ptr.vmem [resolvable:$true] %s22
      %25 = dma.hbm_to_vmem [thread:$0]  %s21, 128, %s23, [#allocation3]
    $region5: #{tpu_custom_call.1} parent=1 // pred_fallthru
      _
    // Predicated region
    $region6: #{tpu_custom_call.1} parent=1 // pred_check
      _
    $region7: #{tpu_custom_call.1} parent=1 // pred_check_branch
      %27 = sbr.rel (0) target = $region9
    $region8: #{tpu_custom_call.1} parent=1 // pred_region
      %29 = vsyncadd [#allocation6], 0
      %s30 = sshll.u32 %s1, 4
      %s31 = int_to_ptr.hbm [resolvable:$true] %s30
      %s32 = sshll.u32 [#allocation5], 4
      %s33 = int_to_ptr.vmem [resolvable:$true] %s32
      %38 = dma.hbm_to_vmem [thread:$0]  %s31, 256, %s33, [#allocation6], 64, 64, 4
    $region9: #{tpu_custom_call.1} parent=1 // pred_fallthru
      _
    // Predicated region
    $region10: #{tpu_custom_call.1} parent=1 // pred_check
      _
    $region11: #{tpu_custom_call.1} parent=1 // pred_check_branch
      %40 = sbr.rel (0) target = $region13
    $region12: #{tpu_custom_call.1} parent=1 // pred_region
      %42 = vsyncadd [#allocation6], 0
      %s43 = sshll.u32 %s2, 4
      %s44 = int_to_ptr.hbm [resolvable:$true] %s43
      %s45 = sshll.u32 [#allocation7], 4
      %s46 = int_to_ptr.vmem [resolvable:$true] %s45
      %51 = dma.hbm_to_vmem [thread:$0]  %s44, 1024, %s46, [#allocation6], 64, 64, 4
    $region13: #{tpu_custom_call.1} parent=1 // pred_fallthru
      _
    // Predicated region
    $region14: #{tpu_custom_call.1} parent=1 // pred_check
      _
    $region15: #{tpu_custom_call.1} parent=1 // pred_check_branch
      %53 = sbr.rel (0) target = $region17
    $region16: #{tpu_custom_call.1} parent=1 // pred_region
      %55 = vsyncadd [#allocation9], 0
      %s56 = sshll.u32 %s3, 4
      %s57 = int_to_ptr.hbm [resolvable:$true] %s56
      %s58 = sshll.u32 [#allocation8], 4
      %s59 = int_to_ptr.vmem [resolvable:$true] %s58
      %64 = dma.hbm_to_vmem [thread:$0]  %s57, 2048, %s59, [#allocation9], 128, 128, 8
    $region17: #{tpu_custom_call.1} parent=1 // pred_fallthru
      _
    // Predicated region
    $region18: #{tpu_custom_call.1} parent=1 // pred_check
      _
    $region19: #{tpu_custom_call.1} parent=1 // pred_check_branch
      %66 = sbr.rel (0) target = $region21
    $region20: #{tpu_custom_call.1} parent=1 // pred_region
      _
    $region21: #{tpu_custom_call.1} parent=1 // pred_fallthru
      _
    // Predicated region
    $region22: #{tpu_custom_call.1} parent=1 // pred_check
      _
    $region23: #{tpu_custom_call.1} parent=1 // pred_check_branch
      %68 = sbr.rel (0) target = $region25
    $region24: #{tpu_custom_call.1} parent=1 // pred_region
      %70 = vsyncadd [#allocation9], 0
      %s72 = sshll.u32 %s5, 4
      %s73 = int_to_ptr.hbm [resolvable:$true] %s72
      %s74 = sshll.u32 [#allocation10], 4
      %s75 = int_to_ptr.vmem [resolvable:$true] %s74
      %77 = dma.hbm_to_vmem [thread:$0]  %s73, 128, %s75, [#allocation9]
    $region25: #{tpu_custom_call.1} parent=1 // pred_fallthru
      _
    // Predicated region
    $region26: #{tpu_custom_call.1} parent=1 // pred_check
      _
    $region27: #{tpu_custom_call.1} parent=1 // pred_check_branch
      %79 = sbr.rel (0) target = $region29
    $region28: #{tpu_custom_call.1} parent=1 // pred_region
      %81 = dma.done [#allocation3], 128
    $region29: #{tpu_custom_call.1} parent=1 // pred_fallthru
      _
    // Predicated region
    $region30: #{tpu_custom_call.1} parent=1 // pred_check
      _
    $region31: #{tpu_custom_call.1} parent=1 // pred_check_branch
      %83 = sbr.rel (0) target = $region33
    $region32: #{tpu_custom_call.1} parent=1 // pred_region
      %85 = dma.done [#allocation6], 256
    $region33: #{tpu_custom_call.1} parent=1 // pred_fallthru
      _
    // Predicated region
    $region34: #{tpu_custom_call.1} parent=1 // pred_check
      _
    $region35: #{tpu_custom_call.1} parent=1 // pred_check_branch
      %87 = sbr.rel (0) target = $region37
    $region36: #{tpu_custom_call.1} parent=1 // pred_region
      %89 = dma.done [#allocation6], 1024
    $region37: #{tpu_custom_call.1} parent=1 // pred_fallthru
      _
    // Predicated region
    $region38: #{tpu_custom_call.1} parent=1 // pred_check
      _
    $region39: #{tpu_custom_call.1} parent=1 // pred_check_branch
      %91 = sbr.rel (0) target = $region41
    $region40: #{tpu_custom_call.1} parent=1 // pred_region
      %93 = dma.done [#allocation9], 2048
    $region41: #{tpu_custom_call.1} parent=1 // pred_fallthru
      _
    // Predicated region
    $region42: #{tpu_custom_call.1} parent=1 // pred_check
      _
    $region43: #{tpu_custom_call.1} parent=1 // pred_check_branch
      %95 = sbr.rel (0) target = $region45
    $region44: #{tpu_custom_call.1} parent=1 // pred_region
      %97 = dma.done [#allocation9], 128
    $region45: #{tpu_custom_call.1} parent=1 // pred_fallthru
      _
    %v99 = vld [vmem:[#allocation10] sm:$0xff]
    %v100 = vld [vmem:[#allocation2] sm:$0xff]
    %v101 = vpack.c.bf16 %v100, %v100
    %v102 = vld [vmem:[#allocation5] sm:$0xf]
    %v103 = vld [vmem:[#allocation5 + $0x4] sm:$0xf]
    %v104 = vld [vmem:[#allocation5 + $0x8] sm:$0xf]
    %v105 = vld [vmem:[#allocation5 + $0xc] sm:$0xf]
    %v106 = vperm.slane %v99, 0
    %v111 = vunpack.c.l.b16 %v102
    %v112 = vunpack.c.l.b16 %v103
    %v113 = vunpack.c.l.b16 %v104
    %v114 = vunpack.c.l.b16 %v105
    %v115 = vpack.c.b16 %v112, %v111
    %v116 = vpack.c.b16 %v114, %v113
    %vm119 = vcmask 261120
    %v121 = vsel %vm119, %v101, 0
    %123 = vmatpush.bf16.msra.mxu0 0
    %124 = vmatpush.bf16.msra.mxu0 0
    %125 = vmatpush.bf16.msra.mxu0 0
    %126 = vmatpush.bf16.msra.mxu0 0
    %127 = vmatpush.bf16.msra.mxu0 0
    %128 = vmatpush.bf16.msra.mxu0 0
    %129 = vmatpush.bf16.msra.mxu0 %v116
    %130 = vmatpush.bf16.msra.mxu0 %v115
    %131 = vmatmul.bf16.gmra.mxu0 %v121
    %v132 = vpop.f32.mrf.mxu0
    %v133 = vadd.f32 %v106, %v132
    %v134 = vpop.f32.mrf.mxu0
    %135 = vdwg.mxu0
    %v136 = vtanh.pop %v133
    %137 = vadd.xlane.f32.xlu0 %v136
    %v138 = vpop.xlane.xlu0 %137
    %v139 = vmul.f32 %v136, %v136
    %140 = vadd.xlane.f32.xlu0 %v139
    %v141 = vpop.xlane.xlu0 %140
    %v142 = vmul.f32 %v138, 0.0078125
    %v143 = vmul.f32 %v141, 0.0078125
    %v144 = vmul.f32 %v142, %v142
    %v145 = vsub.f32 %v143, %v144
    %v146 = vsub.f32 %v136, %v142
    %v147 = vadd.f32 %v145, 1e-05
    %v148 = vrsqrt.pop %v147
    %v149 = vmul.f32 %v148, %v147
    %v150 = vmul.f32 %v149, %v148
    %v151 = vmul.f32 0.5, %v150
    %v152 = vsub.f32 1.5, %v151
    %v153 = vmul.f32 %v148, %v152
    %vm154 = vweird.f32 %v147
    %vm155 = vweird.f32 %v148
    %vm156 = vmor %vm154, %vm155
    %v157 = vsel %vm156, %v148, %v153
    %v158 = vmul.f32 %v146, %v157
    %v159 = vperm.slane %v99, 1
    %v160 = vmul.f32 %v158, %v159
    %v161 = vperm.slane %v99, 2
    %v162 = vadd.f32 %v160, %v161
    %v163 = vpack.c.bf16 %v162, %v162
    %v164 = vld [vmem:[#allocation7] sm:$0xf]
    %v165 = vld [vmem:[#allocation7 + $0x4] sm:$0xf]
    %v166 = vld [vmem:[#allocation7 + $0x8] sm:$0xf]
    %v167 = vld [vmem:[#allocation7 + $0xc] sm:$0xf]
    %v168 = vld [vmem:[#allocation7 + $0x10] sm:$0xf]
    %v169 = vld [vmem:[#allocation7 + $0x14] sm:$0xf]
    %v170 = vld [vmem:[#allocation7 + $0x18] sm:$0xf]
    %v171 = vld [vmem:[#allocation7 + $0x1c] sm:$0xf]
    %v172 = vld [vmem:[#allocation7 + $0x20] sm:$0xf]
    %v173 = vld [vmem:[#allocation7 + $0x24] sm:$0xf]
    %v174 = vld [vmem:[#allocation7 + $0x28] sm:$0xf]
    %v175 = vld [vmem:[#allocation7 + $0x2c] sm:$0xf]
    %v176 = vld [vmem:[#allocation7 + $0x30] sm:$0xf]
    %v177 = vld [vmem:[#allocation7 + $0x34] sm:$0xf]
    %v178 = vld [vmem:[#allocation7 + $0x38] sm:$0xf]
    %v179 = vld [vmem:[#allocation7 + $0x3c] sm:$0xf]
    %v180 = vperm.slane %v99, 3
    %v197 = vunpack.c.l.b16 %v164
    %v198 = vunpack.c.l.b16 %v165
    %v199 = vunpack.c.l.b16 %v166
    %v200 = vunpack.c.l.b16 %v167
    %v201 = vunpack.c.l.b16 %v168
    %v202 = vunpack.c.l.b16 %v169
    %v203 = vunpack.c.l.b16 %v170
    %v204 = vunpack.c.l.b16 %v171
    %v205 = vunpack.c.l.b16 %v172
    %v206 = vunpack.c.l.b16 %v173
    %v207 = vunpack.c.l.b16 %v174
    %v208 = vunpack.c.l.b16 %v175
    %v209 = vunpack.c.l.b16 %v176
    %v210 = vunpack.c.l.b16 %v177
    %v211 = vunpack.c.l.b16 %v178
    %v212 = vunpack.c.l.b16 %v179
    %v213 = vpack.c.b16 %v198, %v197
    %v214 = vpack.c.b16 %v200, %v199
    %v215 = vpack.c.b16 %v202, %v201
    %v216 = vpack.c.b16 %v204, %v203
    %v217 = vpack.c.b16 %v206, %v205
    %v218 = vpack.c.b16 %v208, %v207
    %v219 = vpack.c.b16 %v210, %v209
    %v220 = vpack.c.b16 %v212, %v211
    %229 = vmatpush.bf16.msra.mxu0 %v220
    %230 = vmatpush.bf16.msra.mxu0 %v219
    %231 = vmatpush.bf16.msra.mxu0 %v218
    %232 = vmatpush.bf16.msra.mxu0 %v217
    %233 = vmatpush.bf16.msra.mxu0 %v216
    %234 = vmatpush.bf16.msra.mxu0 %v215
    %235 = vmatpush.bf16.msra.mxu0 %v214
    %236 = vmatpush.bf16.msra.mxu0 %v213
    %237 = vmatmul.bf16.gmra.mxu0 %v163
    %v238 = vpop.f32.mrf.mxu0
    %v239 = vadd.f32 %v180, %v238
    %v240 = vpop.f32.mrf.mxu0
    %241 = vdwg.mxu0
    %v242 = vtanh.pop %v239
    %243 = vadd.xlane.f32.xlu0 %v242
    %v244 = vpop.xlane.xlu0 %243
    %v245 = vmul.f32 %v242, %v242
    %246 = vadd.xlane.f32.xlu0 %v245
    %v247 = vpop.xlane.xlu0 %246
    %v248 = vmul.f32 %v244, 0.0078125
    %v249 = vmul.f32 %v247, 0.0078125
    %v250 = vmul.f32 %v248, %v248
    %v251 = vsub.f32 %v249, %v250
    %v252 = vsub.f32 %v242, %v248
    %v253 = vadd.f32 %v251, 1e-05
    %v254 = vrsqrt.pop %v253
    %v255 = vmul.f32 %v254, %v253
    %v256 = vmul.f32 %v255, %v254
    %v257 = vmul.f32 0.5, %v256
    %v258 = vsub.f32 1.5, %v257
    %v259 = vmul.f32 %v254, %v258
    %vm260 = vweird.f32 %v253
    %vm261 = vweird.f32 %v254
    %vm262 = vmor %vm260, %vm261
    %v263 = vsel %vm262, %v254, %v259
    %v264 = vmul.f32 %v252, %v263
    %v265 = vperm.slane %v99, 4
    %v266 = vmul.f32 %v264, %v265
    %v267 = vperm.slane %v99, 5
    %v268 = vadd.f32 %v266, %v267
    %v269 = vld [vmem:[#allocation8] sm:$0xff]
    %v270 = vld [vmem:[#allocation8 + $0x8] sm:$0xff]
    %v271 = vld [vmem:[#allocation8 + $0x10] sm:$0xff]
    %v272 = vld [vmem:[#allocation8 + $0x18] sm:$0xff]
    %v273 = vld [vmem:[#allocation8 + $0x20] sm:$0xff]
    %v274 = vld [vmem:[#allocation8 + $0x28] sm:$0xff]
    %v275 = vld [vmem:[#allocation8 + $0x30] sm:$0xff]
    %v276 = vld [vmem:[#allocation8 + $0x38] sm:$0xff]
    %v277 = vld [vmem:[#allocation8 + $0x40] sm:$0xff]
    %v278 = vld [vmem:[#allocation8 + $0x48] sm:$0xff]
    %v279 = vld [vmem:[#allocation8 + $0x50] sm:$0xff]
    %v280 = vld [vmem:[#allocation8 + $0x58] sm:$0xff]
    %v281 = vld [vmem:[#allocation8 + $0x60] sm:$0xff]
    %v282 = vld [vmem:[#allocation8 + $0x68] sm:$0xff]
    %v283 = vld [vmem:[#allocation8 + $0x70] sm:$0xff]
    %v284 = vld [vmem:[#allocation8 + $0x78] sm:$0xff]
    %v285 = vld [vmem:[%s4] sm:$0x1]
    %v287 = vperm.slane %v285, 0
    %289 = vmatpush.msra.mxu0 %v284
    %290 = vmatpush.msra.mxu0 %v283
    %291 = vmatpush.msra.mxu0 %v282
    %292 = vmatpush.msra.mxu0 %v281
    %293 = vmatpush.msra.mxu0 %v280
    %294 = vmatpush.msra.mxu0 %v279
    %295 = vmatpush.msra.mxu0 %v278
    %296 = vmatpush.msra.mxu0 %v277
    %297 = vmatpush.msra.mxu0 %v276
    %298 = vmatpush.msra.mxu0 %v275
    %299 = vmatpush.msra.mxu0 %v274
    %300 = vmatpush.msra.mxu0 %v273
    %301 = vmatpush.msra.mxu0 %v272
    %302 = vmatpush.msra.mxu0 %v271
    %303 = vmatpush.msra.mxu0 %v270
    %304 = vmatpush.msra.mxu0 %v269
    %305 = vmatmul.f32.gmra.mxu0 %v268
    %v306 = vpop.f32.mrf.mxu0
    %v307 = vadd.f32 %v287, %v306
    %308 = vdwg.mxu0
    %309 = vmax.xlane.f32.xlu0 %v307
    %v310 = vpop.xlane.xlu0 %309
    %v311 = vsub.f32 %v307, %v310
    %v312 = vmul.f32 %v311, 1.442695
    %v313 = vpow.pop %v312
    %314 = vadd.xlane.f32.xlu0 %v313
    %v315 = vpop.xlane.xlu0 %314
    %v316 = vrcp.pop %v315
    %v317 = vmul.f32 %v315, %v316
    %v318 = vsub.f32 1.0, %v317
    %v319 = vmul.f32 %v316, %v318
    %v320 = vadd.f32 %v316, %v319
    %vm321 = vweird.f32 %v315
    %vm322 = vweird.f32 %v316
    %vm323 = vmor %vm321, %vm322
    %v324 = vsel %vm323, %v316, %v320
    %v325 = vand.u32 2147483647, %v315
    %vm326 = vcmp.eq.f32.partialorder %v325, 8.507059e+37
    %v327 = vand.u32 %v315, 2147483648
    %v328 = vor.u32 1.1754944e-38, %v327
    %v329 = vsel %vm326, %v328, %v324
    %v330 = vmul.f32 %v313, %v329
    %331 = vst [vmem:[#allocation11] sm:$0xff] %v330
    // Predicated region
    $region46: #{tpu_custom_call.1} parent=1 // pred_check
      _
    $region47: #{tpu_custom_call.1} parent=1 // pred_check_branch
      %333 = sbr.rel (0) target = $region49
    $region48: #{tpu_custom_call.1} parent=1 // pred_region
      %335 = vsyncadd [#allocation4], 0
      %s337 = sshll.u32 [#allocation11], 4
      %s338 = int_to_ptr.vmem [resolvable:$true] %s337
      %s339 = sshll.u32 %s6, 4
      %s340 = int_to_ptr.hbm [resolvable:$true] %s339
      %342 = dma.vmem_to_hbm [thread:$0]  %s338, 128, %s340, [#allocation4]
    $region49: #{tpu_custom_call.1} parent=1 // pred_fallthru
      _
    // Predicated region
    $region50: #{tpu_custom_call.1} parent=1 // pred_check
      _
    $region51: #{tpu_custom_call.1} parent=1 // pred_check_branch
      %344 = sbr.rel (0) target = $region53
    $region52: #{tpu_custom_call.1} parent=1 // pred_region
      %346 = dma.done [#allocation4], 128
    $region53: #{tpu_custom_call.1} parent=1 // pred_fallthru
      _
    %347 = vsyncpa [#allocation3], 1
    %348 = vsyncpa [#allocation6], 1
    %349 = vsyncpa [#allocation9], 1
    %350 = vsyncpa [#allocation4], 1

</llo_original>
